<compile_context>
chip_gen: v7x
topology: tpu7x:2x2x1
jax: 0.10.0
libtpu: 0.0.40
codegen_flags: <defaults>
</compile_context>

<pallas_src>
import functools

import jax
import jax.numpy as jnp
from jax import lax
from jax.experimental import pallas as pl
from jax.experimental.pallas import tpu as pltpu


def _qkv_proj_kernel(x_ref, w_ref, b_ref, q_ref, k_ref, v_ref):
    # x_ref: (tm, D); w_ref: (D, 3D); b_ref: (1, 3D)  -- one wide MXU pass.
    y = jnp.dot(x_ref[...], w_ref[...],
                preferred_element_type=jnp.float32) + b_ref[...]
    d = q_ref.shape[-1]
    q_ref[...] = y[:, :d].astype(q_ref.dtype)
    k_ref[...] = y[:, d:2 * d].astype(k_ref.dtype)
    v_ref[...] = y[:, 2 * d:].astype(v_ref.dtype)


def _flash_attn_kernel(q_ref, k_ref, v_ref, o_ref, m_sc, l_sc, acc_sc, *, scale):
    # q_ref: (1, tq, D); k_ref/v_ref: (1, tk, D); o_ref: (1, tq, D)
    ki = pl.program_id(2)

    @pl.when(ki == 0)
    def _():
        m_sc[...] = jnp.full(m_sc.shape, -jnp.inf, dtype=m_sc.dtype)
        l_sc[...] = jnp.zeros(l_sc.shape, dtype=l_sc.dtype)
        acc_sc[...] = jnp.zeros(acc_sc.shape, dtype=acc_sc.dtype)

    q = q_ref[0]   # (tq, D)
    k = k_ref[0]   # (tk, D)
    v = v_ref[0]   # (tk, D)

    # Scores: contract both operands on D (transposed-RHS matmul on the MXU;
    # no explicit k.T through the XLU). f32 accumulation.
    s = lax.dot_general(q, k, (((1,), (1,)), ((), ())),
                        preferred_element_type=jnp.float32) * scale  # (tq, tk)

    # Online (flash-style) softmax update in f32.
    m_prev = m_sc[...]
    m_new = jnp.maximum(m_prev, jnp.max(s, axis=-1, keepdims=True))
    alpha = jnp.exp(m_prev - m_new)
    p = jnp.exp(s - m_new)
    l_sc[...] = alpha * l_sc[...] + jnp.sum(p, axis=-1, keepdims=True)
    acc_sc[...] = alpha * acc_sc[...] + jnp.dot(
        p.astype(v.dtype), v, preferred_element_type=jnp.float32)
    m_sc[...] = m_new

    @pl.when(ki == pl.num_programs(2) - 1)
    def _():
        # Fold 1/denominator into the final (tq, D) scale (cheaper than
        # normalizing the (tq, tk) probability matrix).
        o_ref[0] = (acc_sc[...] * pl.reciprocal(l_sc[...], approx=False)
                    ).astype(o_ref.dtype)


def _pick_tile(n, preferred):
    """Largest tile <= preferred that divides n and is a multiple of 8
    (falls back to the full dimension to satisfy the (8, 128) rule)."""
    if n <= preferred:
        return n
    t = (preferred // 8) * 8
    while t >= 8:
        if n % t == 0:
            return t
        t -= 8
    return n


def self_attention(x, wq, bq, wk, bk, wv, bv, *, compute_dtype=None):
    """x: (B, S, D). w*: (D, D) torch layout (out, in). b*: (D,)."""
    B, S, D = x.shape
    out_dtype = x.dtype
    if compute_dtype is None:
        compute_dtype = x.dtype

    # ---- fused QKV projection: one (D, 3D) weight, one MXU pass ----
    # (torch Linear: y = x @ W.T + b, W is (out, in) -> pre-transpose here)
    wqkv = jnp.concatenate([wq.T, wk.T, wv.T], axis=1).astype(compute_dtype)
    bqkv = jnp.concatenate([bq, bk, bv]).reshape(1, 3 * D).astype(jnp.float32)
    xm = x.reshape(B * S, D).astype(compute_dtype)

    BS = B * S
    tm = _pick_tile(BS, 256)
    qkv_shape = jax.ShapeDtypeStruct((BS, D), compute_dtype)
    row_spec = pl.BlockSpec((tm, D), lambda i: (i, 0))

    q, k, v = pl.pallas_call(
        _qkv_proj_kernel,
        out_shape=(qkv_shape, qkv_shape, qkv_shape),
        grid_spec=pltpu.PrefetchScalarGridSpec(
            num_scalar_prefetch=0,
            grid=(BS // tm,),
            in_specs=[
                row_spec,                                       # x rows
                pl.BlockSpec((D, 3 * D), lambda i: (0, 0)),     # fused Wqkv
                pl.BlockSpec((1, 3 * D), lambda i: (0, 0)),     # fused bias
            ],
            out_specs=(row_spec, row_spec, row_spec),
        ),
        compiler_params=pltpu.CompilerParams(
            dimension_semantics=("parallel",),
            vmem_limit_bytes=48 * 1024 * 1024,
        ),
    )(xm, wqkv, bqkv)

    q = q.reshape(B, S, D)
    k = k.reshape(B, S, D)
    v = v.reshape(B, S, D)

    # ---- flash-style attention: KV-tiled online softmax ----
    tq = _pick_tile(S, 256)
    tk = _pick_tile(S, 512)
    scale = 1.0 / (D ** 0.5)   # module divides by key.in_features ** 0.5

    q_spec = pl.BlockSpec((1, tq, D), lambda b, qi, ki: (b, qi, 0))
    kv_spec = pl.BlockSpec((1, tk, D), lambda b, qi, ki: (b, ki, 0))

    return pl.pallas_call(
        functools.partial(_flash_attn_kernel, scale=scale),
        out_shape=jax.ShapeDtypeStruct((B, S, D), out_dtype),
        grid_spec=pltpu.PrefetchScalarGridSpec(
            num_scalar_prefetch=0,
            grid=(B, S // tq, S // tk),
            in_specs=[q_spec, kv_spec, kv_spec],
            out_specs=q_spec,
            scratch_shapes=[
                pltpu.VMEM((tq, 1), jnp.float32),   # running row max
                pltpu.VMEM((tq, 1), jnp.float32),   # running denominator
                pltpu.VMEM((tq, D), jnp.float32),   # f32 output accumulator
            ],
        ),
        compiler_params=pltpu.CompilerParams(
            dimension_semantics=("parallel", "parallel", "arbitrary"),
            vmem_limit_bytes=48 * 1024 * 1024,
        ),
    )(q, k, v)


def _reference(x, wq, bq, wk, bk, wv, bv):
    # Pure-JAX reference matching the PyTorch forward exactly.
    q = x @ wq.T + bq
    k = x @ wk.T + bk
    v = x @ wv.T + bv
    d = x.shape[-1]
    s = (q @ jnp.swapaxes(k, -2, -1)) / (d ** 0.5)
    a = jax.nn.softmax(s, axis=-1)
    return a @ v


if __name__ == "__main__":
    B, S, D = 2, 8, 32
    key = jax.random.PRNGKey(0)
    kx, k1, k2, k3, k4, k5, k6 = jax.random.split(key, 7)

    x = jax.random.normal(kx, (B, S, D), dtype=jnp.float32)
    # Deterministic parameter init (shapes follow nn.Linear(D, D))
    wq = jax.random.normal(k1, (D, D), dtype=jnp.float32) * 0.1
    bq = jax.random.normal(k2, (D,), dtype=jnp.float32) * 0.1
    wk = jax.random.normal(k3, (D, D), dtype=jnp.float32) * 0.1
    bk = jax.random.normal(k4, (D,), dtype=jnp.float32) * 0.1
    wv = jax.random.normal(k5, (D, D), dtype=jnp.float32) * 0.1
    bv = jax.random.normal(k6, (D,), dtype=jnp.float32) * 0.1

    ref = _reference(x, wq, bq, wk, bk, wv, bv)

    # f32 MXU path -- tight tolerance against the pure-JAX reference.
    out = jax.block_until_ready(self_attention(x, wq, bq, wk, bk, wv, bv))
    assert out.shape == (B, S, D)
    assert jnp.allclose(out, ref, atol=1e-4, rtol=1e-4), "f32 mismatch vs reference"

    # bf16 MXU inputs with f32 accumulation -- looser tolerance.
    out_bf16 = jax.block_until_ready(
        self_attention(x, wq, bq, wk, bk, wv, bv, compute_dtype=jnp.bfloat16))
    assert out_bf16.shape == (B, S, D)
    assert jnp.allclose(out_bf16, ref, atol=5e-2, rtol=5e-2), "bf16 mismatch vs reference"

    print("KERNEL_OK")
</pallas_src>

<mosaic_0001>
module attributes {stable_mosaic.version = 11 : i64} {
  func.func @_qkv_proj_kernel(%arg0: i32, %arg1: memref<16x32xf32, #tpu.memory_space<vmem>>, %arg2: memref<32x96xf32, #tpu.memory_space<vmem>>, %arg3: memref<1x96xf32, #tpu.memory_space<vmem>>, %arg4: memref<16x32xf32, #tpu.memory_space<vmem>>, %arg5: memref<16x32xf32, #tpu.memory_space<vmem>>, %arg6: memref<16x32xf32, #tpu.memory_space<vmem>>) attributes {dimension_semantics = [#tpu.dimension_semantics<parallel>], iteration_bounds = array<i64: 1>, scalar_prefetch = 0 : i64, scratch_operands = 0 : i64, tpu.core_type = #tpu.core_type<tc>, window_params = [{transform_indices = @transform_0, window_bounds = array<i64: 16, 32>}, {pipeline_mode = #tpu.pipeline_mode<synchronous>, transform_indices = @transform_1, window_bounds = array<i64: 32, 96>}, {pipeline_mode = #tpu.pipeline_mode<synchronous>, transform_indices = @transform_2, window_bounds = array<i64: 1, 96>}, {transform_indices = @transform_3, window_bounds = array<i64: 16, 32>}, {transform_indices = @transform_4, window_bounds = array<i64: 16, 32>}, {transform_indices = @transform_5, window_bounds = array<i64: 16, 32>}]} {
    %c0 = arith.constant 0 : index
    %c0_0 = arith.constant 0 : index
    %0 = vector.load %arg1[%c0, %c0_0] : memref<16x32xf32, #tpu.memory_space<vmem>>, vector<16x32xf32>
    %c0_1 = arith.constant 0 : index
    %c0_2 = arith.constant 0 : index
    %1 = vector.load %arg2[%c0_1, %c0_2] : memref<32x96xf32, #tpu.memory_space<vmem>>, vector<32x96xf32>
    %cst = arith.constant dense<0.000000e+00> : vector<16x96xf32>
    %2 = tpu.matmul %0, %1, %cst {dimension_numbers = #tpu.dot_dimension_numbers<[1], [0], [0], [1], [0, 0, 1, 1], [], []>} : vector<16x32xf32>, vector<32x96xf32>, vector<16x96xf32> -> vector<16x96xf32>
    %c0_3 = arith.constant 0 : index
    %c0_4 = arith.constant 0 : index
    %3 = vector.load %arg3[%c0_3, %c0_4] : memref<1x96xf32, #tpu.memory_space<vmem>>, vector<1x96xf32>
    %4 = vector.broadcast %3 : vector<1x96xf32> to vector<16x96xf32>
    %5 = arith.addf %2, %4 : vector<16x96xf32>
    %6 = vector.extract_strided_slice %5 {offsets = [0, 0], sizes = [16, 32], strides = [1, 1]} : vector<16x96xf32> to vector<16x32xf32>
    %c0_5 = arith.constant 0 : index
    %c0_6 = arith.constant 0 : index
    %7 = vector.load %arg4[%c0_5, %c0_6] : memref<16x32xf32, #tpu.memory_space<vmem>>, vector<16x32xf32>
    tpu.vector_store %arg4[%c0_5, %c0_6], %6 {strides = array<i32>} : memref<16x32xf32, #tpu.memory_space<vmem>>, vector<16x32xf32>,
    %8 = vector.extract_strided_slice %5 {offsets = [0, 32], sizes = [16, 32], strides = [1, 1]} : vector<16x96xf32> to vector<16x32xf32>
    %c0_7 = arith.constant 0 : index
    %c0_8 = arith.constant 0 : index
    %9 = vector.load %arg5[%c0_7, %c0_8] : memref<16x32xf32, #tpu.memory_space<vmem>>, vector<16x32xf32>
    tpu.vector_store %arg5[%c0_7, %c0_8], %8 {strides = array<i32>} : memref<16x32xf32, #tpu.memory_space<vmem>>, vector<16x32xf32>,
    %10 = vector.extract_strided_slice %5 {offsets = [0, 64], sizes = [16, 32], strides = [1, 1]} : vector<16x96xf32> to vector<16x32xf32>
    %c0_9 = arith.constant 0 : index
    %c0_10 = arith.constant 0 : index
    %11 = vector.load %arg6[%c0_9, %c0_10] : memref<16x32xf32, #tpu.memory_space<vmem>>, vector<16x32xf32>
    tpu.vector_store %arg6[%c0_9, %c0_10], %10 {strides = array<i32>} : memref<16x32xf32, #tpu.memory_space<vmem>>, vector<16x32xf32>,
    return
  }
  func.func @transform_0(%arg0: i32) -> (i32, i32) {
    %c0_i32 = arith.constant 0 : i32
    %c0_i32_0 = arith.constant 0 : i32
    return %arg0, %c0_i32 : i32, i32
  }
  func.func @transform_1(%arg0: i32) -> (i32, i32) {
    %c0_i32 = arith.constant 0 : i32
    %c0_i32_0 = arith.constant 0 : i32
    %c0_i32_1 = arith.constant 0 : i32
    return %c0_i32, %c0_i32_0 : i32, i32
  }
  func.func @transform_2(%arg0: i32) -> (i32, i32) {
    %c0_i32 = arith.constant 0 : i32
    %c0_i32_0 = arith.constant 0 : i32
    %c0_i32_1 = arith.constant 0 : i32
    return %c0_i32, %c0_i32_0 : i32, i32
  }
  func.func @transform_3(%arg0: i32) -> (i32, i32) {
    %c0_i32 = arith.constant 0 : i32
    %c0_i32_0 = arith.constant 0 : i32
    return %arg0, %c0_i32 : i32, i32
  }
  func.func @transform_4(%arg0: i32) -> (i32, i32) {
    %c0_i32 = arith.constant 0 : i32
    %c0_i32_0 = arith.constant 0 : i32
    return %arg0, %c0_i32 : i32, i32
  }
  func.func @transform_5(%arg0: i32) -> (i32, i32) {
    %c0_i32 = arith.constant 0 : i32
    %c0_i32_0 = arith.constant 0 : i32
    return %arg0, %c0_i32 : i32, i32
  }
}

</mosaic_0001>

<llo_original>
// kernel: tpu_custom_call.1
$region0: #{tpu_custom_call.1}
  #allocation0 [shape = 'u32[]', space=smem, size = 0x4, offset = 0x4, fixed_abs, tag = 'smem constant byte address 0x4 - core index']
  #allocation1 [shape = 'u32[144,128]{1,0:T(1,128)}', space=vmem, size = 0x12000, scoped, tag = 'internal scratch']
  %s0 = inlined_call_operand.hbm [shape: f32[16,32], index: 0, kind: input, shape index: {}]
  %s1 = inlined_call_operand.hbm [shape: f32[32,96], index: 1, kind: input, shape index: {}]
  %s2 = inlined_call_operand.vmem [shape: f32[1,96], index: 2, kind: input, shape index: {}]
  %s3 = inlined_call_operand.hbm [shape: f32[16,32], index: 3, kind: output, shape index: {0}]
  %s4 = inlined_call_operand.hbm [shape: f32[16,32], index: 4, kind: output, shape index: {1}]
  %s5 = inlined_call_operand.hbm [shape: f32[16,32], index: 5, kind: output, shape index: {2}]
  %6 = xla_tuple %s3, %s4, %s5
  %s7 = sld [smem:[#allocation0]]
  $region46: #{tpu_custom_call.1} parent=0
    _
  %s9 = ssub.s32 1, %s7
  %s10 = scalar_select 0, %s9, %s7
  $region1: #{tpu_custom_call.1} parent=0
    #allocation2 [shape = 'u8[8192]{0}', space=vmem, size = 0x2000, scoped, tag = 'input window, operand 0, single buffered']
    #allocation3 [shape = 's32[1]{0}', space=sflag, size = 0x4, scoped, tag = 'scoped memory for tpu_custom_call.1']
    #allocation4 [shape = 's32[1]{0}', space=sflag, size = 0x4, scoped, tag = 'scoped memory for tpu_custom_call.1']
    #allocation5 [shape = 'u8[16384]{0}', space=vmem, size = 0x4000, scoped, tag = 'input window, operand 1, single buffered']
    #allocation6 [shape = 's32[1]{0}', space=sflag, size = 0x4, scoped, tag = 'scoped memory for tpu_custom_call.1']
    #allocation7 [shape = 'u8[8192]{0}', space=vmem, size = 0x2000, scoped, tag = 'output window, operand 0, single buffered']
    #allocation8 [shape = 'u8[8192]{0}', space=vmem, size = 0x2000, scoped, tag = 'output window, operand 1, single buffered']
    #allocation9 [shape = 's32[1]{0}', space=sflag, size = 0x4, scoped, tag = 'scoped memory for tpu_custom_call.1']
    #allocation10 [shape = 'u8[8192]{0}', space=vmem, size = 0x2000, scoped, tag = 'output window, operand 2, single buffered']
    %11 = vsyncpa [#allocation3], 0
    %12 = vsyncpa [#allocation6], 0
    %13 = vsyncpa [#allocation4], 0
    %14 = vsyncpa [#allocation9], 0
    // Predicated region
    $region2: #{tpu_custom_call.1} parent=1 // pred_check
      _
    $region3: #{tpu_custom_call.1} parent=1 // pred_check_branch
      %16 = sbr.rel (0) target = $region5
    $region4: #{tpu_custom_call.1} parent=1 // pred_region
      %s18 = ssub.s32 256, 256
      %19 = vsyncadd [#allocation3], %s18
      %s20 = sshll.u32 [#allocation2], 4
      %s21 = int_to_ptr.vmem [resolvable:$true] %s20
      %26 = dma.hbm_to_vmem [thread:$0]  %s0, 256, %s21, [#allocation3], 128, 128, 8
    $region5: #{tpu_custom_call.1} parent=1 // pred_fallthru
      _
    // Predicated region
    $region6: #{tpu_custom_call.1} parent=1 // pred_check
      _
    $region7: #{tpu_custom_call.1} parent=1 // pred_check_branch
      %28 = sbr.rel (0) target = $region9
    $region8: #{tpu_custom_call.1} parent=1 // pred_region
      %s30 = ssub.s32 512, 512
      %31 = vsyncadd [#allocation6], %s30
      %s32 = sshll.u32 [#allocation5], 4
      %s33 = int_to_ptr.vmem [resolvable:$true] %s32
      %38 = dma.hbm_to_vmem [thread:$0]  %s1, 512, %s33, [#allocation6], 128, 128, 8
    $region9: #{tpu_custom_call.1} parent=1 // pred_fallthru
      _
    // Predicated region
    $region10: #{tpu_custom_call.1} parent=1 // pred_check
      _
    $region11: #{tpu_custom_call.1} parent=1 // pred_check_branch
      %40 = sbr.rel (0) target = $region13
    $region12: #{tpu_custom_call.1} parent=1 // pred_region
      _
    $region13: #{tpu_custom_call.1} parent=1 // pred_fallthru
      _
    // Predicated region
    $region14: #{tpu_custom_call.1} parent=1 // pred_check
      _
    $region15: #{tpu_custom_call.1} parent=1 // pred_check_branch
      %42 = sbr.rel (0) target = $region17
    $region16: #{tpu_custom_call.1} parent=1 // pred_region
      %43 = dma.done [#allocation3], 256
    $region17: #{tpu_custom_call.1} parent=1 // pred_fallthru
      _
    // Predicated region
    $region18: #{tpu_custom_call.1} parent=1 // pred_check
      _
    $region19: #{tpu_custom_call.1} parent=1 // pred_check_branch
      %45 = sbr.rel (0) target = $region21
    $region20: #{tpu_custom_call.1} parent=1 // pred_region
      %46 = dma.done [#allocation6], 512
    $region21: #{tpu_custom_call.1} parent=1 // pred_fallthru
      _
    %v47 = vld [vmem:[#allocation2] sm:$0xff]
    %v48 = vld [vmem:[#allocation2 + $0x8] sm:$0xff]
    %v49 = vld [vmem:[#allocation5] sm:$0xff]
    %v50 = vld [vmem:[#allocation5 + $0x8] sm:$0xff]
    %v51 = vld [vmem:[#allocation5 + $0x10] sm:$0xff]
    %v52 = vld [vmem:[#allocation5 + $0x18] sm:$0xff]
    %v53 = vld [vmem:[%s2] sm:$0x1]
    %v55 = vlaneseq
    %v56 = vshrl.u32 %v55, 7
    %v57 = vsub.s32 0, %v56
    %v58 = vrot.slane %v53, %v57
    %vm60 = vcmask 261120
    %v62 = vsel %vm60, %v47, 0
    %v65 = vsel %vm60, %v48, 0
    %67 = vmatprep.subr.mxu0 0.0
    %68 = vmatpush1.msra.mxu0 %v49
    %69 = vmatprep.subr.mxu0 0.0
    %70 = vmatpush1.msra.mxu0 %v50
    %71 = vmatprep.subr.mxu0 0.0
    %72 = vmatpush1.msra.mxu0 %v51
    %73 = vmatprep.subr.mxu0 0.0
    %74 = vmatpush1.msra.mxu0 %v52
    %75 = vmatprep.subr.mxu0 0.0
    %76 = vmatpush1.msra.mxu0 0.0
    %77 = vmatprep.subr.mxu0 0.0
    %78 = vmatpush1.msra.mxu0 0.0
    %79 = vmatprep.subr.mxu0 0.0
    %80 = vmatpush1.msra.mxu0 0.0
    %81 = vmatprep.subr.mxu0 0.0
    %82 = vmatpush1.msra.mxu0 0.0
    %83 = vmatprep.subr.mxu0 0.0
    %84 = vmatpush1.msra.mxu0 0.0
    %85 = vmatprep.subr.mxu0 0.0
    %86 = vmatpush1.msra.mxu0 0.0
    %87 = vmatprep.subr.mxu0 0.0
    %88 = vmatpush1.msra.mxu0 0.0
    %89 = vmatprep.subr.mxu0 0.0
    %90 = vmatpush1.msra.mxu0 0.0
    %91 = vmatprep.subr.mxu0 0.0
    %92 = vmatpush1.msra.mxu0 0.0
    %93 = vmatprep.subr.mxu0 0.0
    %94 = vmatpush1.msra.mxu0 0.0
    %95 = vmatprep.subr.mxu0 0.0
    %96 = vmatpush1.msra.mxu0 0.0
    %97 = vmatprep.subr.mxu0 0.0
    %98 = vmatpush1.msra.mxu0 0.0
    %99 = vmatprep.subr.mxu0 0.0
    %100 = vmatpush1.msra.mxu0 0.0
    %101 = vmatprep.subr.mxu0 0.0
    %102 = vmatpush1.msra.mxu0 0.0
    %103 = vmatprep.subr.mxu0 0.0
    %104 = vmatpush1.msra.mxu0 0.0
    %105 = vmatprep.subr.mxu0 0.0
    %106 = vmatpush1.msra.mxu0 0.0
    %107 = vmatprep.subr.mxu0 0.0
    %108 = vmatpush1.msra.mxu0 0.0
    %109 = vmatprep.subr.mxu0 0.0
    %110 = vmatpush1.msra.mxu0 0.0
    %111 = vmatprep.subr.mxu0 0.0
    %112 = vmatpush1.msra.mxu0 0.0
    %113 = vmatprep.subr.mxu0 0.0
    %114 = vmatpush1.msra.mxu0 0.0
    %115 = vmatprep.subr.mxu0 0.0
    %116 = vmatpush1.msra.mxu0 0.0
    %117 = vmatprep.subr.mxu0 0.0
    %118 = vmatpush1.msra.mxu0 0.0
    %119 = vmatprep.subr.mxu0 0.0
    %120 = vmatpush1.msra.mxu0 0.0
    %121 = vmatprep.subr.mxu0 0.0
    %122 = vmatpush1.msra.mxu0 0.0
    %123 = vmatprep.subr.mxu0 0.0
    %124 = vmatpush1.msra.mxu0 0.0
    %125 = vmatprep.subr.mxu0 0.0
    %126 = vmatpush1.msra.mxu0 0.0
    %127 = vmatprep.subr.mxu0 0.0
    %128 = vmatpush1.msra.mxu0 0.0
    %129 = vmatprep.subr.mxu0 0.0
    %130 = vmatpush1.msra.mxu0 0.0
    %131 = vmatprep.mubr.f32.mxu0 0.0
    %132 = vmatmul.mubr.f32.gmra.mrb[0].mxu0 %v62
    %v133 = vpop.f32.mrb[0].mxu0
    %v134 = vadd.f32 %v58, %v133
    %v135 = vpop.f32.mrb[0].mxu0
    %136 = vmatprep.mubr.f32.mxu0 0.0
    %137 = vmatmul.mubr.f32.gmra.mrb[0].mxu0 %v65
    %v138 = vpop.f32.mrb[0].mxu0
    %v139 = vadd.f32 %v58, %v138
    %v140 = vpop.f32.mrb[0].mxu0
    %141 = vdwg.mxu0
    %142 = vst.msk [vmem:[#allocation7] sm:$0xff] %vm60, %v134
    %143 = vst.msk [vmem:[#allocation7 + $0x8] sm:$0xff] %vm60, %v139
    %146 = vrot.lane.b32.xlu0 %v134, 96
    %v147 = vpop.permute.xlu0 %146
    %148 = vrot.lane.b32.xlu0 %v139, 96
    %v149 = vpop.permute.xlu0 %148
    %152 = vst.msk [vmem:[#allocation8] sm:$0xff] %vm60, %v147
    %153 = vst.msk [vmem:[#allocation8 + $0x8] sm:$0xff] %vm60, %v149
    %154 = vrot.lane.b32.xlu0 %v134, 64
    %v155 = vpop.permute.xlu0 %154
    %156 = vrot.lane.b32.xlu0 %v139, 64
    %v157 = vpop.permute.xlu0 %156
    %160 = vst.msk [vmem:[#allocation10] sm:$0xff] %vm60, %v155
    %161 = vst.msk [vmem:[#allocation10 + $0x8] sm:$0xff] %vm60, %v157
    // Predicated region
    $region22: #{tpu_custom_call.1} parent=1 // pred_check
      _
    $region23: #{tpu_custom_call.1} parent=1 // pred_check_branch
      %163 = sbr.rel (0) target = $region25
    $region24: #{tpu_custom_call.1} parent=1 // pred_region
      %s165 = ssub.s32 256, 256
      %166 = vsyncadd [#allocation4], %s165
      %s167 = sshll.u32 [#allocation7], 4
      %s168 = int_to_ptr.vmem [resolvable:$true] %s167
      %173 = dma.vmem_to_hbm [thread:$0]  %s168, 256, %s3, [#allocation4], 128, 128, 8
    $region25: #{tpu_custom_call.1} parent=1 // pred_fallthru
      _
    // Predicated region
    $region26: #{tpu_custom_call.1} parent=1 // pred_check
      _
    $region27: #{tpu_custom_call.1} parent=1 // pred_check_branch
      %175 = sbr.rel (0) target = $region29
    $region28: #{tpu_custom_call.1} parent=1 // pred_region
      %s177 = ssub.s32 256, 256
      %178 = vsyncadd [#allocation9], %s177
      %s179 = sshll.u32 [#allocation8], 4
      %s180 = int_to_ptr.vmem [resolvable:$true] %s179
      %185 = dma.vmem_to_hbm [thread:$0]  %s180, 256, %s4, [#allocation9], 128, 128, 8
    $region29: #{tpu_custom_call.1} parent=1 // pred_fallthru
      _
    // Predicated region
    $region30: #{tpu_custom_call.1} parent=1 // pred_check
      _
    $region31: #{tpu_custom_call.1} parent=1 // pred_check_branch
      %187 = sbr.rel (0) target = $region33
    $region32: #{tpu_custom_call.1} parent=1 // pred_region
      %s189 = ssub.s32 256, 256
      %190 = vsyncadd [#allocation9], %s189
      %s191 = sshll.u32 [#allocation10], 4
      %s192 = int_to_ptr.vmem [resolvable:$true] %s191
      %197 = dma.vmem_to_hbm [thread:$0]  %s192, 256, %s5, [#allocation9], 128, 128, 8
    $region33: #{tpu_custom_call.1} parent=1 // pred_fallthru
      _
    // Predicated region
    $region34: #{tpu_custom_call.1} parent=1 // pred_check
      _
    $region35: #{tpu_custom_call.1} parent=1 // pred_check_branch
      %199 = sbr.rel (0) target = $region37
    $region36: #{tpu_custom_call.1} parent=1 // pred_region
      %200 = dma.done [#allocation4], 256
    $region37: #{tpu_custom_call.1} parent=1 // pred_fallthru
      _
    // Predicated region
    $region38: #{tpu_custom_call.1} parent=1 // pred_check
      _
    $region39: #{tpu_custom_call.1} parent=1 // pred_check_branch
      %202 = sbr.rel (0) target = $region41
    $region40: #{tpu_custom_call.1} parent=1 // pred_region
      %203 = dma.done [#allocation9], 256
    $region41: #{tpu_custom_call.1} parent=1 // pred_fallthru
      _
    // Predicated region
    $region42: #{tpu_custom_call.1} parent=1 // pred_check
      _
    $region43: #{tpu_custom_call.1} parent=1 // pred_check_branch
      %205 = sbr.rel (0) target = $region45
    $region44: #{tpu_custom_call.1} parent=1 // pred_region
      %206 = dma.done [#allocation9], 256
    $region45: #{tpu_custom_call.1} parent=1 // pred_fallthru
      _
    %207 = vsyncpa [#allocation3], 1
    %208 = vsyncpa [#allocation6], 1
    %209 = vsyncpa [#allocation4], 1
    %210 = vsyncpa [#allocation9], 1

</llo_original>
